<compile_context>
chip_gen: v6e
topology: v6e:2x2x1
jax: 0.10.0
libtpu: 0.0.40
codegen_flags: <defaults>
</compile_context>

<pallas_src>
import jax
import jax.numpy as jnp
from jax import lax
from jax.experimental import pallas as pl
from jax.experimental.pallas import tpu as pltpu


def _round_up(x, m):
    return (x + m - 1) // m * m


def _repeat_kernel(uncond_ref, out_ref):
    # uncond_ref: [S, D] VMEM tile; same block index every grid step -> fetched
    #             from HBM exactly once and stays resident.
    # out_ref:    [bb, S, D] output block for batch block pl.program_id(0).
    src = uncond_ref[...]
    bb = out_ref.shape[0]

    def body(b, carry):
        out_ref[b] = src  # one S x D slab live at a time; stores stream out
        return carry

    lax.fori_loop(0, bb, body, 0)


def dummy_openclip_text_embedder(x, uncond):
    """Returns uncond[None].repeat(bs, 1, 1) where bs = x.shape[0]."""
    bs = x.shape[0]
    S, D = uncond.shape
    dtype = uncond.dtype

    if bs == 0:
        return jnp.zeros((0, S, D), dtype=dtype)

    itemsize = jnp.dtype(dtype).itemsize
    # Honest (layout-padded) VMEM footprint of one batch row of the output.
    per_batch_bytes = _round_up(S, 8) * _round_up(D, 128) * itemsize

    # ~12 MiB per output block: 2 double-buffered writeback blocks plus the
    # (double-buffered) resident uncond tile stay under the 32 MiB scoped-VMEM
    # limit requested below, which itself is safe on v5e/v6e (128 MiB physical)
    # and v7x (64 MiB physical).
    budget_bytes = 12 << 20
    bb = max(1, min(bs, budget_bytes // max(1, per_batch_bytes)))
    # Keep >= 2 grid steps when bs allows, so the "parallel" batch axis shards
    # across both TensorCores on v7x and both cores issue writeback DMA.
    if bs >= 2:
        bb = min(bb, pl.cdiv(bs, 2))
    grid = (pl.cdiv(bs, bb),)  # ragged last block is masked by Pallas

    assert 2 * bb * per_batch_bytes + 2 * per_batch_bytes <= (30 << 20), (
        "uncond slab too large for the fixed VMEM budget")
    # TODO(synk): add an S/D-split tiling fallback for enormous S*D (not needed
    # for OpenCLIP's 77x1024 null-text embedding).

    return pl.pallas_call(
        _repeat_kernel,
        out_shape=jax.ShapeDtypeStruct((bs, S, D), dtype),
        grid=grid,
        in_specs=[
            # Same (S, D) block at every grid step -> resident in VMEM.
            pl.BlockSpec((S, D), lambda i: (0, 0)),
        ],
        out_specs=pl.BlockSpec((bb, S, D), lambda i: (i, 0, 0)),
        compiler_params=pltpu.CompilerParams(
            dimension_semantics=("parallel",),
            vmem_limit_bytes=32 << 20,
        ),
    )(uncond)


if __name__ == "__main__":
    key = jax.random.PRNGKey(0)
    k_x, k_u = jax.random.split(key)

    # Small shapes: batch=2, NCHW image input (contents irrelevant to the op),
    # null-text embedding with seq=8, hidden=128 (stand-in for OpenCLIP 77x1024).
    B, C, H, W = 2, 4, 16, 16
    S, D = 8, 128

    x = jax.random.normal(k_x, (B, C, H, W), dtype=jnp.float32)
    # Deterministic stand-in for np.load('nulltext.npy').squeeze(0)
    uncond = jax.random.normal(k_u, (S, D), dtype=jnp.float32)

    out = dummy_openclip_text_embedder(x, uncond)
    out = jax.block_until_ready(out)

    # Reference check: uncond[None].repeat(bs, 1, 1)
    ref = jnp.broadcast_to(uncond[None], (B, S, D))
    assert out.shape == (B, S, D), out.shape
    assert out.dtype == uncond.dtype
    assert bool(jnp.array_equal(out, ref))

    print("KERNEL_OK")
</pallas_src>

<mosaic_0001>
module attributes {stable_mosaic.version = 11 : i64} {
  func.func @_repeat_kernel(%arg0: i32, %arg1: memref<8x128xf32, #tpu.memory_space<vmem>>, %arg2: memref<1x8x128xf32, #tpu.memory_space<vmem>>) attributes {dimension_semantics = [#tpu.dimension_semantics<parallel>], iteration_bounds = array<i64: 2>, scalar_prefetch = 0 : i64, scratch_operands = 0 : i64, tpu.core_type = #tpu.core_type<tc>, window_params = [{pipeline_mode = #tpu.pipeline_mode<synchronous>, transform_indices = @transform_0, window_bounds = array<i64: 8, 128>}, {transform_indices = @transform_1, window_bounds = array<i64: 1, 8, 128>}]} {
    %c0 = arith.constant 0 : index
    %c0_0 = arith.constant 0 : index
    %0 = vector.load %arg1[%c0, %c0_0] : memref<8x128xf32, #tpu.memory_space<vmem>>, vector<8x128xf32>
    %c0_i32 = arith.constant 0 : i32
    %1 = arith.index_cast %c0_i32 : i32 to index
    %c0_1 = arith.constant 0 : index
    %c0_2 = arith.constant 0 : index
    %2 = vector.load %arg2[%1, %c0_1, %c0_2] : memref<1x8x128xf32, #tpu.memory_space<vmem>>, vector<1x8x128xf32>
    %3 = vector.shape_cast %2 : vector<1x8x128xf32> to vector<8x128xf32>
    %4 = vector.shape_cast %0 : vector<8x128xf32> to vector<1x8x128xf32>
    tpu.vector_store %arg2[%1, %c0_1, %c0_2], %4 {strides = array<i32>} : memref<1x8x128xf32, #tpu.memory_space<vmem>>, vector<1x8x128xf32>,
    %c1_i32 = arith.constant 1 : i32
    return
  }
  func.func @transform_0(%arg0: i32) -> (i32, i32) {
    %c0_i32 = arith.constant 0 : i32
    %c0_i32_0 = arith.constant 0 : i32
    %c0_i32_1 = arith.constant 0 : i32
    return %c0_i32, %c0_i32_0 : i32, i32
  }
  func.func @transform_1(%arg0: i32) -> (i32, i32, i32) {
    %c0_i32 = arith.constant 0 : i32
    %c0_i32_0 = arith.constant 0 : i32
    %c0_i32_1 = arith.constant 0 : i32
    return %arg0, %c0_i32, %c0_i32_0 : i32, i32, i32
  }
}

</mosaic_0001>

<llo_original>
// kernel: tpu_custom_call.1
$region0: #{tpu_custom_call.1}
  #allocation0 [shape = 'u32[]', space=smem, size = 0x4, offset = 0x4, fixed_abs, tag = 'smem constant byte address 0x4 - core index']
  #allocation1 [shape = 'u32[144,128]{1,0:T(1,128)}', space=vmem, size = 0x12000, scoped, tag = 'internal scratch']
  %s0 = inlined_call_operand.hbm [shape: f32[8,128], index: 0, kind: input, shape index: {}]
  %s1 = inlined_call_operand.hbm [shape: f32[2,8,128], index: 1, kind: output, shape index: {}]
  %s2 = sld [smem:[#allocation0]]
  $region41: #{tpu_custom_call.1} parent=0
    _
  %s4 = ssub.s32 1, %s2
  %s5 = scalar_select 0, %s4, %s2
  $region1: #{tpu_custom_call.1} parent=0
    #allocation2 [shape = 'u8[4096]{0}', space=vmem, size = 0x1000, scoped, tag = 'input window, operand 0, single buffered']
    #allocation3 [shape = 's32[2]{0}', space=sflag, size = 0x8, scoped, tag = 'scoped memory for tpu_custom_call.1']
    #allocation4 [shape = 's32[2]{0}', space=sflag, size = 0x8, scoped, tag = 'scoped memory for tpu_custom_call.1']
    #allocation5 [shape = 'u8[8192]{0}', space=vmem, size = 0x2000, scoped, tag = 'output window, operand 0']
    %6 = vsyncpa [#allocation3], 0
    %7 = vsyncpa [#allocation4], 0
    %s8 = scalar_lea.sflag [#allocation4], 1
    %9 = vsyncpa %s8, 0
    loop: start=0, step=1, limit=4
    $region2: #{tpu_custom_call.1} parent=1 // loop_pre_header
      _
    $region3: #{tpu_custom_call.1} parent=1 // loop_header
      %s11 = sphi 0, %s15
      %p12 = scmp.ge.s32.totalorder %s11, 4
      %s19 = sphi 0, %s19
      %s21 = sphi 0, %s19
      %s22 = sphi 0, %s21
      %s36 = sphi 0, %s22
      %s42 = sphi 0, %s44
      %s45 = sphi 0, %s42
      %s46 = sphi 0, %s45
      %s62 = sphi 0, %s46
    $region4: #{tpu_custom_call.1} parent=1 // loop_header_branch
      %14 = sbr.rel (%p12) target = $region8
    $region5: #{tpu_custom_call.1} parent=1 // loop_body
      %s16 = ssub.s32 %s11, 1
      %s17 = ssub.s32 %s11, 2
      %s18 = sadd.s32 %s11, 1
      %s20 = sadd.s32 %s19, 1
      %p23 = scmp.eq.s32.totalorder %s11, 1
      %p24 = scmp.ne.s32.totalorder %s19, %s21
      %p25 = scmp.eq.s32.totalorder %s11, 0
      %p26 = por %p24, %p25
      %p27 = scmp.ne.s32.totalorder %s19, %s21
      %p28 = scmp.eq.s32.totalorder %s16, 1
      %p29 = por %p27, %p28
      %p30 = scmp.ne.s32.totalorder %s21, %s22
      %p31 = scmp.eq.s32.totalorder %s16, 0
      %p32 = por %p30, %p31
      %p33 = scmp.ne.s32.totalorder %s21, %s22
      %p34 = scmp.eq.s32.totalorder %s17, 1
      %p35 = por %p33, %p34
      %p37 = scmp.ne.s32.totalorder %s22, %s36
      %p38 = scmp.eq.s32.totalorder %s17, 0
      %p39 = por %p37, %p38
      %s40 = ssub.s32 %s11, %s18
      %p41 = scmp.eq.s32.totalorder %s40, 0
      %s43 = sadd.s32 %s42, 1
      %s44 = scalar_select %p41, %s42, %s43
      %p47 = pneg %p41
      %p48 = scmp.eq.s32.totalorder %s11, 1
      %p49 = por %p47, %p48
      %p50 = scmp.ne.s32.totalorder %s42, %s45
      %p51 = scmp.eq.s32.totalorder %s11, 0
      %p52 = por %p50, %p51
      %p53 = scmp.ne.s32.totalorder %s42, %s45
      %p54 = scmp.eq.s32.totalorder %s16, 1
      %p55 = por %p53, %p54
      %p56 = scmp.ne.s32.totalorder %s45, %s46
      %p57 = scmp.eq.s32.totalorder %s16, 0
      %p58 = por %p56, %p57
      %p59 = scmp.ne.s32.totalorder %s45, %s46
      %p60 = scmp.eq.s32.totalorder %s17, 1
      %p61 = por %p59, %p60
      %p63 = scmp.ne.s32.totalorder %s46, %s62
      %p64 = scmp.eq.s32.totalorder %s17, 0
      %p65 = por %p63, %p64
      %p66 = scmp.le.s32.totalorder 1, %s11
      %p67 = scmp.lt.s32.totalorder %s11, 3
      %p68 = pnand %p66, %p67
      %p69 = pneg %p68
      // Predicated region
      $region9: #{tpu_custom_call.1} parent=5 // pred_check
        _
      $region10: #{tpu_custom_call.1} parent=5 // pred_check_branch
        %71 = sbr.rel (%p68) target = $region12
      $region11: #{tpu_custom_call.1} parent=5 // pred_region
        %s72 = ssub.s32 %s11, 1
        // Predicated region
        $region13: #{tpu_custom_call.1} parent=11 // pred_check
          %p73 = pneg %p32
        $region14: #{tpu_custom_call.1} parent=11 // pred_check_branch
          %75 = sbr.rel (%p73) target = $region16
        $region15: #{tpu_custom_call.1} parent=11 // pred_region
          %s77 = ssub.s32 128, 128
          %78 = vsyncadd [#allocation3], %s77
          %s80 = sshll.u32 [#allocation2], 4
          %s81 = int_to_ptr.vmem [resolvable:$true] %s80
          %83 = dma.hbm_to_vmem [thread:$0]  %s0, 128, %s81, [#allocation3]
        $region16: #{tpu_custom_call.1} parent=11 // pred_fallthru
          _
      $region12: #{tpu_custom_call.1} parent=5 // pred_fallthru
        _
      %p84 = scmp.lt.s32.totalorder %s11, 2
      // Predicated region
      $region17: #{tpu_custom_call.1} parent=5 // pred_check
        %p85 = pneg %p84
      $region18: #{tpu_custom_call.1} parent=5 // pred_check_branch
        %87 = sbr.rel (%p85) target = $region20
      $region19: #{tpu_custom_call.1} parent=5 // pred_region
        _
      $region20: #{tpu_custom_call.1} parent=5 // pred_fallthru
        _
      %p88 = scmp.le.s32.totalorder 1, %s11
      %p89 = scmp.lt.s32.totalorder %s11, 3
      %p90 = pnand %p88, %p89
      %p91 = pneg %p90
      // Predicated region
      $region21: #{tpu_custom_call.1} parent=5 // pred_check
        _
      $region22: #{tpu_custom_call.1} parent=5 // pred_check_branch
        %93 = sbr.rel (%p90) target = $region24
      $region23: #{tpu_custom_call.1} parent=5 // pred_region
        %s94 = ssub.s32 %s11, 1
        // Predicated region
        $region25: #{tpu_custom_call.1} parent=23 // pred_check
          %p95 = pneg %p32
        $region26: #{tpu_custom_call.1} parent=23 // pred_check_branch
          %97 = sbr.rel (%p95) target = $region28
        $region27: #{tpu_custom_call.1} parent=23 // pred_region
          %98 = dma.done [#allocation3], 128
        $region28: #{tpu_custom_call.1} parent=23 // pred_fallthru
          _
        %p99 = pneg %p32
        %p100 = pneg %p29
        %p101 = pneg %p58
        %p102 = pneg %p55
        %s103 = sand.u32 %s45, 1
        %s104 = scalar_lea.sflag [#allocation4], %s103
        %s105 = sand.u32 %s45, 1
        %s106 = smul.addr %s105, 8
        %s107 = scalar_lea.vmem [#allocation5], %s106
        %v108 = vld [vmem:[#allocation2] sm:$0xff]
        %109 = vst [vmem:[%s107] sm:$0xff] %v108
        %s110 = sand.u32 %s45, 1
        %s111 = scalar_lea.sflag [#allocation4], %s110
        %s112 = sand.u32 %s45, 1
        %s113 = smul.addr %s112, 8
        %s114 = scalar_lea.vmem [#allocation5], %s113
        // Predicated region
        $region29: #{tpu_custom_call.1} parent=23 // pred_check
          %p115 = pneg %p55
        $region30: #{tpu_custom_call.1} parent=23 // pred_check_branch
          %117 = sbr.rel (%p115) target = $region32
        $region31: #{tpu_custom_call.1} parent=23 // pred_region
          %s119 = ssub.s32 128, 128
          %120 = vsyncadd %s111, %s119
          %s121 = smul.addr %s16, 128
          %s122 = scalar_lea.hbm %s1, %s121
          %s124 = sshll.u32 %s114, 4
          %s125 = int_to_ptr.vmem [resolvable:$true] %s124
          %127 = dma.vmem_to_hbm [thread:$0]  %s125, 128, %s122, %s111
        $region32: #{tpu_custom_call.1} parent=23 // pred_fallthru
          _
      $region24: #{tpu_custom_call.1} parent=5 // pred_fallthru
        _
      %p128 = scmp.le.s32.totalorder 2, %s11
      // Predicated region
      $region33: #{tpu_custom_call.1} parent=5 // pred_check
        %p129 = pneg %p128
      $region34: #{tpu_custom_call.1} parent=5 // pred_check_branch
        %131 = sbr.rel (%p129) target = $region36
      $region35: #{tpu_custom_call.1} parent=5 // pred_region
        %s132 = ssub.s32 %s11, 2
        // Predicated region
        $region37: #{tpu_custom_call.1} parent=35 // pred_check
          %p133 = pneg %p61
        $region38: #{tpu_custom_call.1} parent=35 // pred_check_branch
          %135 = sbr.rel (%p133) target = $region40
        $region39: #{tpu_custom_call.1} parent=35 // pred_region
          %s136 = sand.u32 %s46, 1
          %s137 = scalar_lea.sflag [#allocation4], %s136
          %s138 = sand.u32 %s46, 1
          %s139 = smul.addr %s138, 8
          %s140 = scalar_lea.vmem [#allocation5], %s139
          %141 = dma.done %s137, 128
        $region40: #{tpu_custom_call.1} parent=35 // pred_fallthru
          _
      $region36: #{tpu_custom_call.1} parent=5 // pred_fallthru
        _
    $region6: #{tpu_custom_call.1} parent=1 // loop_footer
      %s15 = sadd.s32 1, %s11
    $region7: #{tpu_custom_call.1} parent=1 // loop_footer_branch
      %10 = sbr.rel target = $region3
    $region8: #{tpu_custom_call.1} parent=1 // loop_exit
      _
    %142 = vsyncpa [#allocation3], 1
    %s143 = scalar_lea.sflag [#allocation3], 1
    %144 = vsyncpa %s143, 1
    %145 = vsyncpa [#allocation4], 1
    %s146 = scalar_lea.sflag [#allocation4], 1
    %147 = vsyncpa %s146, 1

</llo_original>
